<compile_context>
chip_gen: v7x
topology: tpu7x:2x2x1
jax: 0.10.0
libtpu: 0.0.40
codegen_flags: <defaults>
</compile_context>

<pallas_src>
import functools

import jax
import jax.numpy as jnp
from jax.experimental import pallas as pl
from jax.experimental.pallas import tpu as pltpu

_LANE = 128


def _round_up(v, m):
    return ((v + m - 1) // m) * m


def _two_layer_kernel(x_ref, w1_ref, b1_ref, w2_ref, b2_ref, o_ref):
    """out = relu(x @ w1 + b1) @ w2 + b2 for one batch tile.

    x:  (tm, D_in)      f32  (cast to bf16 here -> single HBM pass over x)
    w1: (D_in, H)       bf16 (VMEM-resident across the whole grid)
    b1: (1, H)          f32
    w2: (H, D_out_pad)  bf16 (lane-padded for the in-VMEM compute)
    b2: (1, D_out_pad)  f32
    o:  (tm, D_out)     f32  (only the real columns are written back)
    """
    x = x_ref[...].astype(jnp.bfloat16)                       # VPU cast, free under DMA slack
    h = jnp.dot(x, w1_ref[...], preferred_element_type=jnp.float32)
    h = jnp.maximum(h + b1_ref[...], 0.0)                     # f32 bias + ReLU (VPU)
    y = jnp.dot(h.astype(jnp.bfloat16), w2_ref[...],
                preferred_element_type=jnp.float32)
    y = y + b2_ref[...]
    # Narrow store: only the real D_out columns hit HBM (masked vst) instead of
    # a 128-lane-padded f32 writeback plus a wrapper-side re-slice pass.
    o_ref[...] = y[:, : o_ref.shape[-1]].astype(o_ref.dtype)


def prepare_params(w1, b1, w2, b2):
    """One-time parameter prep, hoisted out of the per-call path.

    Accepts torch.nn.Linear layout directly:
      w1: (H, D_in), b1: (H,) or (1, H), w2: (D_out, H), b2: (D_out,) or (1, D_out).
    Returns bf16 (in, out)-layout weights, f32 row-vector biases with the
    second-layer output dim zero-padded to a lane multiple, plus D_out.
    """
    w1 = jnp.asarray(w1, jnp.float32).T                       # (D_in, H)
    w2 = jnp.asarray(w2, jnp.float32).T                       # (H, D_out)
    b1 = jnp.reshape(jnp.asarray(b1, jnp.float32), (1, -1))   # (1, H)
    b2 = jnp.reshape(jnp.asarray(b2, jnp.float32), (1, -1))   # (1, D_out)

    d_in, h = w1.shape
    h2, d_out = w2.shape
    assert h == h2 and b1.shape[1] == h and b2.shape[1] == d_out

    d_out_pad = _round_up(d_out, _LANE)
    if d_out_pad != d_out:
        # Zero weight/bias columns: padded output columns compute zeros inside
        # VMEM and are never written back to HBM by the kernel.
        w2 = jnp.pad(w2, ((0, 0), (0, d_out_pad - d_out)))
        b2 = jnp.pad(b2, ((0, 0), (0, d_out_pad - d_out)))

    return (w1.astype(jnp.bfloat16), b1, w2.astype(jnp.bfloat16), b2, int(d_out))


@functools.partial(jax.jit, static_argnames=("d_out", "block_m"))
def _two_layer_forward(x, w1b, b1f, w2b, b2f, *, d_out, block_m):
    n, d_in = x.shape
    h = w1b.shape[1]
    d_out_pad = w2b.shape[1]

    # Batch tile:
    #  * small N: single tile (toy / latency regime).
    #  * large N: at least 2 independent tiles so the "parallel" grid axis can
    #    shard across both TensorCores on v7x; tm a multiple of 16 for bf16
    #    sublane packing; large default block_m amortizes per-step overhead.
    if n <= 256:
        tm = n
    else:
        tm = min(block_m, _round_up(pl.cdiv(n, 2), 16))
    grid = (pl.cdiv(n, tm),)

    # Explicit scoped-VMEM budget (v7x only has 64 MiB physical VMEM; v5e/v6e
    # have 128 MiB but default scoped limits are much lower).  2x headroom.
    vmem_est = (
        2 * tm * d_in * 4                      # x tile, double-buffered (f32)
        + 2 * tm * d_out * 4                   # out tile, double-buffered (f32)
        + (d_in * h + h * d_out_pad) * 2       # resident bf16 weights
        + (h + d_out_pad) * 4                  # resident f32 biases
        + tm * (h + d_out_pad) * 4             # f32 intermediates (h, y)
    )
    vmem_limit = int(min(max(2 * vmem_est, 16 * 1024 * 1024), 64 * 1024 * 1024))

    return pl.pallas_call(
        _two_layer_kernel,
        out_shape=jax.ShapeDtypeStruct((n, d_out), jnp.float32),
        grid_spec=pltpu.PrefetchScalarGridSpec(
            num_scalar_prefetch=0,
            grid=grid,
            in_specs=[
                pl.BlockSpec((tm, d_in), lambda i: (i, 0)),        # x: batch-tiled, f32
                pl.BlockSpec((d_in, h), lambda i: (0, 0)),         # w1: VMEM-resident
                pl.BlockSpec((1, h), lambda i: (0, 0)),            # b1: VMEM-resident
                pl.BlockSpec((h, d_out_pad), lambda i: (0, 0)),    # w2: VMEM-resident
                pl.BlockSpec((1, d_out_pad), lambda i: (0, 0)),    # b2: VMEM-resident
            ],
            out_specs=pl.BlockSpec((tm, d_out), lambda i: (i, 0)), # narrow real-column store
        ),
        compiler_params=pltpu.CompilerParams(
            # Batch tiles are independent -> megacore-shardable on v7x.
            dimension_semantics=("parallel",),
            vmem_limit_bytes=vmem_limit,
        ),
    )(x, w1b, b1f, w2b, b2f)


def two_layer_net(x, params, *, block_m=1024):
    """Forward pass: relu(x @ W1^T + b1) @ W2^T + b2, params from prepare_params()."""
    w1b, b1f, w2b, b2f, d_out = params
    return _two_layer_forward(x.astype(jnp.float32), w1b, b1f, w2b, b2f,
                              d_out=d_out, block_m=block_m)


if __name__ == "__main__":
    # XOR-style sizes from examples/xor_linf1.py: D_in=2, H=32, D_out=1, batch=8.
    N, D_in, H, D_out = 8, 2, 32, 1

    key = jax.random.PRNGKey(0)
    kx, k1, kb1, k2, kb2 = jax.random.split(key, 5)

    x = jax.random.normal(kx, (N, D_in), dtype=jnp.float32)

    # torch.nn.Linear-style parameters: weight (out, in), 1-D bias,
    # U(-1/sqrt(fan_in), 1/sqrt(fan_in)) init.
    bound1 = 1.0 / (D_in ** 0.5)
    bound2 = 1.0 / (H ** 0.5)
    w1 = jax.random.uniform(k1, (H, D_in), jnp.float32, -bound1, bound1)
    b1 = jax.random.uniform(kb1, (H,), jnp.float32, -bound1, bound1)
    w2 = jax.random.uniform(k2, (D_out, H), jnp.float32, -bound2, bound2)
    b2 = jax.random.uniform(kb2, (D_out,), jnp.float32, -bound2, bound2)

    params = prepare_params(w1, b1, w2, b2)   # one-time prep, reused across calls
    y = two_layer_net(x, params)
    jax.block_until_ready(y)
    assert y.shape == (N, D_out)

    # Reference with the same bf16-operand / f32-accumulate recipe (tight tol).
    h_bf = jnp.maximum(
        jnp.dot(x.astype(jnp.bfloat16), w1.T.astype(jnp.bfloat16),
                preferred_element_type=jnp.float32) + b1, 0.0)
    y_bf = jnp.dot(h_bf.astype(jnp.bfloat16), w2.T.astype(jnp.bfloat16),
                   preferred_element_type=jnp.float32) + b2
    assert jnp.allclose(y, y_bf, atol=1e-3, rtol=1e-3)

    # Sanity vs pure-f32 torch forward (loose tol for the bf16 operand casts).
    y_f32 = jnp.maximum(x @ w1.T + b1, 0.0) @ w2.T + b2
    assert jnp.allclose(y, y_f32, atol=5e-2, rtol=5e-2)

    print("KERNEL_OK")
</pallas_src>

<mosaic_0001>
module attributes {stable_mosaic.version = 11 : i64} {
  func.func @_two_layer_kernel(%arg0: i32, %arg1: memref<8x2xf32, #tpu.memory_space<vmem>>, %arg2: memref<2x32xbf16, #tpu.memory_space<vmem>>, %arg3: memref<1x32xf32, #tpu.memory_space<vmem>>, %arg4: memref<32x128xbf16, #tpu.memory_space<vmem>>, %arg5: memref<1x128xf32, #tpu.memory_space<vmem>>, %arg6: memref<8x1xf32, #tpu.memory_space<vmem>>) attributes {dimension_semantics = [#tpu.dimension_semantics<parallel>], iteration_bounds = array<i64: 1>, scalar_prefetch = 0 : i64, scratch_operands = 0 : i64, tpu.core_type = #tpu.core_type<tc>, window_params = [{transform_indices = @transform_0, window_bounds = array<i64: 8, 2>}, {pipeline_mode = #tpu.pipeline_mode<synchronous>, transform_indices = @transform_1, window_bounds = array<i64: 2, 32>}, {pipeline_mode = #tpu.pipeline_mode<synchronous>, transform_indices = @transform_2, window_bounds = array<i64: 1, 32>}, {pipeline_mode = #tpu.pipeline_mode<synchronous>, transform_indices = @transform_3, window_bounds = array<i64: 32, 128>}, {pipeline_mode = #tpu.pipeline_mode<synchronous>, transform_indices = @transform_4, window_bounds = array<i64: 1, 128>}, {transform_indices = @transform_5, window_bounds = array<i64: 8, 1>}]} {
    %c0 = arith.constant 0 : index
    %c0_0 = arith.constant 0 : index
    %0 = vector.load %arg1[%c0, %c0_0] : memref<8x2xf32, #tpu.memory_space<vmem>>, vector<8x2xf32>
    %1 = arith.truncf %0 : vector<8x2xf32> to vector<8x2xbf16>
    %c0_1 = arith.constant 0 : index
    %c0_2 = arith.constant 0 : index
    %2 = vector.load %arg2[%c0_1, %c0_2] : memref<2x32xbf16, #tpu.memory_space<vmem>>, vector<2x32xbf16>
    %cst = arith.constant dense<0.000000e+00> : vector<8x32xf32>
    %3 = tpu.matmul %1, %2, %cst {dimension_numbers = #tpu.dot_dimension_numbers<[1], [0], [0], [1], [0, 0, 1, 1], [], []>} : vector<8x2xbf16>, vector<2x32xbf16>, vector<8x32xf32> -> vector<8x32xf32>
    %c0_3 = arith.constant 0 : index
    %c0_4 = arith.constant 0 : index
    %4 = vector.load %arg3[%c0_3, %c0_4] : memref<1x32xf32, #tpu.memory_space<vmem>>, vector<1x32xf32>
    %5 = vector.broadcast %4 : vector<1x32xf32> to vector<8x32xf32>
    %6 = arith.addf %3, %5 : vector<8x32xf32>
    %cst_5 = arith.constant 0.000000e+00 : f32
    %7 = vector.broadcast %cst_5 : f32 to vector<8x32xf32>
    %8 = arith.maximumf %6, %7 : vector<8x32xf32>
    %9 = arith.truncf %8 : vector<8x32xf32> to vector<8x32xbf16>
    %c0_6 = arith.constant 0 : index
    %c0_7 = arith.constant 0 : index
    %10 = vector.load %arg4[%c0_6, %c0_7] : memref<32x128xbf16, #tpu.memory_space<vmem>>, vector<32x128xbf16>
    %cst_8 = arith.constant dense<0.000000e+00> : vector<8x128xf32>
    %11 = tpu.matmul %9, %10, %cst_8 {dimension_numbers = #tpu.dot_dimension_numbers<[1], [0], [0], [1], [0, 0, 1, 1], [], []>} : vector<8x32xbf16>, vector<32x128xbf16>, vector<8x128xf32> -> vector<8x128xf32>
    %c0_9 = arith.constant 0 : index
    %c0_10 = arith.constant 0 : index
    %12 = vector.load %arg5[%c0_9, %c0_10] : memref<1x128xf32, #tpu.memory_space<vmem>>, vector<1x128xf32>
    %13 = vector.broadcast %12 : vector<1x128xf32> to vector<8x128xf32>
    %14 = arith.addf %11, %13 : vector<8x128xf32>
    %15 = vector.extract_strided_slice %14 {offsets = [0, 0], sizes = [8, 1], strides = [1, 1]} : vector<8x128xf32> to vector<8x1xf32>
    %c0_11 = arith.constant 0 : index
    %c0_12 = arith.constant 0 : index
    %16 = vector.load %arg6[%c0_11, %c0_12] : memref<8x1xf32, #tpu.memory_space<vmem>>, vector<8x1xf32>
    tpu.vector_store %arg6[%c0_11, %c0_12], %15 {strides = array<i32>} : memref<8x1xf32, #tpu.memory_space<vmem>>, vector<8x1xf32>,
    return
  }
  func.func @transform_0(%arg0: i32) -> (i32, i32) {
    %c0_i32 = arith.constant 0 : i32
    %c0_i32_0 = arith.constant 0 : i32
    return %arg0, %c0_i32 : i32, i32
  }
  func.func @transform_1(%arg0: i32) -> (i32, i32) {
    %c0_i32 = arith.constant 0 : i32
    %c0_i32_0 = arith.constant 0 : i32
    %c0_i32_1 = arith.constant 0 : i32
    return %c0_i32, %c0_i32_0 : i32, i32
  }
  func.func @transform_2(%arg0: i32) -> (i32, i32) {
    %c0_i32 = arith.constant 0 : i32
    %c0_i32_0 = arith.constant 0 : i32
    %c0_i32_1 = arith.constant 0 : i32
    return %c0_i32, %c0_i32_0 : i32, i32
  }
  func.func @transform_3(%arg0: i32) -> (i32, i32) {
    %c0_i32 = arith.constant 0 : i32
    %c0_i32_0 = arith.constant 0 : i32
    %c0_i32_1 = arith.constant 0 : i32
    return %c0_i32, %c0_i32_0 : i32, i32
  }
  func.func @transform_4(%arg0: i32) -> (i32, i32) {
    %c0_i32 = arith.constant 0 : i32
    %c0_i32_0 = arith.constant 0 : i32
    %c0_i32_1 = arith.constant 0 : i32
    return %c0_i32, %c0_i32_0 : i32, i32
  }
  func.func @transform_5(%arg0: i32) -> (i32, i32) {
    %c0_i32 = arith.constant 0 : i32
    %c0_i32_0 = arith.constant 0 : i32
    return %arg0, %c0_i32 : i32, i32
  }
}

</mosaic_0001>

<llo_original>
// kernel: _two_layer_forward.1
$region0: #{_two_layer_forward.1}
  #allocation0 [shape = 'u32[]', space=smem, size = 0x4, offset = 0x4, fixed_abs, tag = 'smem constant byte address 0x4 - core index']
  #allocation1 [shape = 'u32[144,128]{1,0:T(1,128)}', space=vmem, size = 0x12000, scoped, tag = 'internal scratch']
  %s0 = inlined_call_operand.vmem [shape: f32[8,2], index: 0, kind: input, shape index: {}]
  %s1 = inlined_call_operand.vmem [shape: bf16[2,32], index: 1, kind: input, shape index: {}]
  %s2 = inlined_call_operand.vmem [shape: f32[1,32], index: 2, kind: input, shape index: {}]
  %s3 = inlined_call_operand.vmem [shape: bf16[32,128], index: 3, kind: input, shape index: {}]
  %s4 = inlined_call_operand.vmem [shape: f32[1,128], index: 4, kind: input, shape index: {}]
  %s5 = inlined_call_operand.vmem [shape: f32[8,1], index: 5, kind: output, shape index: {}]
  %s6 = sld [smem:[#allocation0]]
  $region30: #{_two_layer_forward.1} parent=0
    _
  %s8 = ssub.s32 1, %s6
  %s9 = scalar_select 0, %s8, %s6
  // Predicated region
  $region2: #{_two_layer_forward.1} parent=0 // pred_check
    _
  $region3: #{_two_layer_forward.1} parent=0 // pred_check_branch
    %11 = sbr.rel (0) target = $region5
  $region4: #{_two_layer_forward.1} parent=0 // pred_region
    _
  $region5: #{_two_layer_forward.1} parent=0 // pred_fallthru
    _
  // Predicated region
  $region6: #{_two_layer_forward.1} parent=0 // pred_check
    _
  $region7: #{_two_layer_forward.1} parent=0 // pred_check_branch
    %13 = sbr.rel (0) target = $region9
  $region8: #{_two_layer_forward.1} parent=0 // pred_region
    _
  $region9: #{_two_layer_forward.1} parent=0 // pred_fallthru
    _
  // Predicated region
  $region10: #{_two_layer_forward.1} parent=0 // pred_check
    _
  $region11: #{_two_layer_forward.1} parent=0 // pred_check_branch
    %15 = sbr.rel (0) target = $region13
  $region12: #{_two_layer_forward.1} parent=0 // pred_region
    _
  $region13: #{_two_layer_forward.1} parent=0 // pred_fallthru
    _
  // Predicated region
  $region14: #{_two_layer_forward.1} parent=0 // pred_check
    _
  $region15: #{_two_layer_forward.1} parent=0 // pred_check_branch
    %17 = sbr.rel (0) target = $region17
  $region16: #{_two_layer_forward.1} parent=0 // pred_region
    _
  $region17: #{_two_layer_forward.1} parent=0 // pred_fallthru
    _
  // Predicated region
  $region18: #{_two_layer_forward.1} parent=0 // pred_check
    _
  $region19: #{_two_layer_forward.1} parent=0 // pred_check_branch
    %19 = sbr.rel (0) target = $region21
  $region20: #{_two_layer_forward.1} parent=0 // pred_region
    _
  $region21: #{_two_layer_forward.1} parent=0 // pred_fallthru
    _
  %v21 = vld [vmem:[%s0] sm:$0xff]
  %v22 = vpack.c.bf16 %v21, %v21
  %v23 = vld [vmem:[%s1] sm:$0x1]
  %v24 = vld [vmem:[%s2] sm:$0x1]
  %v26 = vlaneseq
  %v27 = vshrl.u32 %v26, 7
  %v28 = vsub.s32 0, %v27
  %v29 = vrot.slane %v24, %v28
  %vm31 = vcmask 15360
  %v33 = vsel %vm31, %v22, 0
  %vm35 = vcmask 1040384
  %v37 = vsel %vm35, %v23, 0
  %39 = vmatprep.subr.bf16.mxu0 0
  %40 = vmatpush1.bf16.msra.mxu0 %v37
  %41 = vmatprep.subr.bf16.mxu0 0
  %42 = vmatpush1.bf16.msra.mxu0 0
  %43 = vmatprep.subr.bf16.mxu0 0
  %44 = vmatpush1.bf16.msra.mxu0 0
  %45 = vmatprep.subr.bf16.mxu0 0
  %46 = vmatpush1.bf16.msra.mxu0 0
  %47 = vmatprep.subr.bf16.mxu0 0
  %48 = vmatpush1.bf16.msra.mxu0 0
  %49 = vmatprep.subr.bf16.mxu0 0
  %50 = vmatpush1.bf16.msra.mxu0 0
  %51 = vmatprep.subr.bf16.mxu0 0
  %52 = vmatpush1.bf16.msra.mxu0 0
  %53 = vmatprep.subr.bf16.mxu0 0
  %54 = vmatpush1.bf16.msra.mxu0 0
  %55 = vmatprep.subr.bf16.mxu0 0
  %56 = vmatpush1.bf16.msra.mxu0 0
  %57 = vmatprep.subr.bf16.mxu0 0
  %58 = vmatpush1.bf16.msra.mxu0 0
  %59 = vmatprep.subr.bf16.mxu0 0
  %60 = vmatpush1.bf16.msra.mxu0 0
  %61 = vmatprep.subr.bf16.mxu0 0
  %62 = vmatpush1.bf16.msra.mxu0 0
  %63 = vmatprep.subr.bf16.mxu0 0
  %64 = vmatpush1.bf16.msra.mxu0 0
  %65 = vmatprep.subr.bf16.mxu0 0
  %66 = vmatpush1.bf16.msra.mxu0 0
  %67 = vmatprep.subr.bf16.mxu0 0
  %68 = vmatpush1.bf16.msra.mxu0 0
  %69 = vmatprep.subr.bf16.mxu0 0
  %70 = vmatpush1.bf16.msra.mxu0 0
  %71 = vmatprep.mubr.bf16.mxu0 0
  %72 = vmatmul.mubr.bf16.gmra.mrb[0].mxu0 %v33
  %v73 = vpop.f32.mrb[0].mxu0
  %v74 = vadd.f32 %v29, %v73
  %v75 = vpop.f32.mrb[0].mxu0
  %v76 = vpop.f32.mrb[0].mxu0
  %v77 = vpop.f32.mrb[0].mxu0
  %78 = vdwg.mxu0
  %v79 = vmax.f32 %v74, 0.0
  %v80 = vpack.c.bf16 %v79, %v79
  %v81 = vld [vmem:[%s3] sm:$0xf]
  %v82 = vld [vmem:[%s3 + $0x4] sm:$0xf]
  %v83 = vld [vmem:[%s3 + $0x8] sm:$0xf]
  %v84 = vld [vmem:[%s3 + $0xc] sm:$0xf]
  %v85 = vld [vmem:[%s4] sm:$0x1]
  %v87 = vlaneseq
  %v88 = vshrl.u32 %v87, 7
  %v89 = vsub.s32 0, %v88
  %v90 = vrot.slane %v85, %v89
  %v96 = vunpack.c.l.b16 %v81
  %v97 = vunpack.c.l.b16 %v82
  %v98 = vunpack.c.l.b16 %v83
  %v99 = vunpack.c.l.b16 %v84
  %v100 = vpack.c.b16 %v97, %v96
  %v101 = vpack.c.b16 %v99, %v98
  %vm104 = vcmask 261120
  %v106 = vsel %vm104, %v80, 0
  %108 = vmatprep.subr.bf16.mxu0 0
  %109 = vmatpush1.bf16.msra.mxu0 %v100
  %110 = vmatprep.subr.bf16.mxu0 0
  %111 = vmatpush1.bf16.msra.mxu0 %v101
  %112 = vmatprep.subr.bf16.mxu0 0
  %113 = vmatpush1.bf16.msra.mxu0 0
  %114 = vmatprep.subr.bf16.mxu0 0
  %115 = vmatpush1.bf16.msra.mxu0 0
  %116 = vmatprep.subr.bf16.mxu0 0
  %117 = vmatpush1.bf16.msra.mxu0 0
  %118 = vmatprep.subr.bf16.mxu0 0
  %119 = vmatpush1.bf16.msra.mxu0 0
  %120 = vmatprep.subr.bf16.mxu0 0
  %121 = vmatpush1.bf16.msra.mxu0 0
  %122 = vmatprep.subr.bf16.mxu0 0
  %123 = vmatpush1.bf16.msra.mxu0 0
  %124 = vmatprep.subr.bf16.mxu0 0
  %125 = vmatpush1.bf16.msra.mxu0 0
  %126 = vmatprep.subr.bf16.mxu0 0
  %127 = vmatpush1.bf16.msra.mxu0 0
  %128 = vmatprep.subr.bf16.mxu0 0
  %129 = vmatpush1.bf16.msra.mxu0 0
  %130 = vmatprep.subr.bf16.mxu0 0
  %131 = vmatpush1.bf16.msra.mxu0 0
  %132 = vmatprep.subr.bf16.mxu0 0
  %133 = vmatpush1.bf16.msra.mxu0 0
  %134 = vmatprep.subr.bf16.mxu0 0
  %135 = vmatpush1.bf16.msra.mxu0 0
  %136 = vmatprep.subr.bf16.mxu0 0
  %137 = vmatpush1.bf16.msra.mxu0 0
  %138 = vmatprep.subr.bf16.mxu0 0
  %139 = vmatpush1.bf16.msra.mxu0 0
  %140 = vmatprep.mubr.bf16.mxu0 0
  %141 = vmatmul.mubr.bf16.gmra.mrb[0].mxu0 %v106
  %v142 = vpop.f32.mrb[0].mxu0
  %v143 = vadd.f32 %v90, %v142
  %v144 = vpop.f32.mrb[0].mxu0
  %v145 = vpop.f32.mrb[0].mxu0
  %v146 = vpop.f32.mrb[0].mxu0
  %147 = vdwg.mxu0
  %vm148 = vcmask 7168
  %149 = vst.msk [vmem:[%s5] sm:$0xff] %vm148, %v143
  // Predicated region
  $region22: #{_two_layer_forward.1} parent=0 // pred_check
    _
  $region23: #{_two_layer_forward.1} parent=0 // pred_check_branch
    %151 = sbr.rel (0) target = $region25
  $region24: #{_two_layer_forward.1} parent=0 // pred_region
    _
  $region25: #{_two_layer_forward.1} parent=0 // pred_fallthru
    _
  // Predicated region
  $region26: #{_two_layer_forward.1} parent=0 // pred_check
    _
  $region27: #{_two_layer_forward.1} parent=0 // pred_check_branch
    %153 = sbr.rel (0) target = $region29
  $region28: #{_two_layer_forward.1} parent=0 // pred_region
    _
  $region29: #{_two_layer_forward.1} parent=0 // pred_fallthru
    _

</llo_original>
